<compile_context>
chip_gen: v7x
topology: tpu7x:2x2x1
jax: 0.10.0
libtpu: 0.0.40
codegen_flags: <defaults>
</compile_context>

<pallas_src>
import math

import jax
import jax.numpy as jnp
from jax.experimental import pallas as pl
from jax.experimental.pallas import tpu as pltpu

LOG_2PI = math.log(2.0 * math.pi)
_LANE = 128
_SUBLANE = 8


def _round_up(v, m):
    return ((v + m - 1) // m) * m


def _default_tile_d():
    """Chip-gated reduction tile width: larger on 128-MiB-VMEM chips (v5e/v6e)."""
    try:
        vmem = getattr(pltpu.get_tpu_info(), "vmem_capacity_bytes", 0)
    except Exception:
        vmem = 0
    return 4096 if vmem >= 96 * 1024 * 1024 else 2048


def _gaussian_prior_kernel(x_ref, prec_t_ref, m2p_t_ref, out_ref):
    """Accumulates the batch-dependent quadratic terms of the Gaussian log-prob.

    x_ref:      (TB, TD)  tile of the flattened input (zero-padded rows/cols)
    prec_t_ref: (TD, K8)  tile of W^T with W = exp(-2*logsd)   (zero-padded)
    m2p_t_ref:  (TD, K8)  tile of (-2*mean*W)^T                (zero-padded)
    out_ref:    (TB, K8)  resident accumulator of
                          sum_d [ x^2 * W - 2 * x * mean * W ]
    """
    d = pl.program_id(1)

    @pl.when(d == 0)
    def _():
        out_ref[...] = jnp.zeros_like(out_ref)

    x = x_ref[...]                                       # (TB, TD) f32
    quad = jnp.dot(x * x, prec_t_ref[...],
                   preferred_element_type=jnp.float32)   # (TB, K8)
    cross = jnp.dot(x, m2p_t_ref[...],
                    preferred_element_type=jnp.float32)  # (TB, K8)
    out_ref[...] += quad + cross


def gaussian_prior_forward(x, params, z_list, *, learntop=True,
                           tile_d=None, batch_block=256):
    """JAX/Pallas equivalent of GaussianPrior.forward.

    x:       (B, C, H, W) float32, NCHW.
    params:  list of n_classes arrays of shape (1, 2C, H, W) (MeanVarFC params),
             or None when learntop=False (IdentityFunc prior).
    Returns: (p_x_given_class (B, n_classes) float32, z_list) -- z_list passthrough.
    """
    B, C, H, W = x.shape
    D = C * H * W
    n_classes = len(params) if params is not None else 1

    x2d = x.reshape(B, D).astype(jnp.float32)

    if learntop and params is not None:
        # MeanVarFC applied to zeros -> mean_and_logsd == param; chunk on channels.
        mean2d = jnp.stack([p[0, :C].reshape(D) for p in params], 0).astype(jnp.float32)
        lraw2d = jnp.stack([p[0, C:].reshape(D) for p in params], 0).astype(jnp.float32)
        logsd = -1.0 + jax.nn.softplus(lraw2d)           # min_logsd + Softplus(raw)
    else:
        # IdentityFunc prior on zeros -> mean = 0, logsd = 0 (standard normal).
        mean2d = jnp.zeros((n_classes, D), jnp.float32)
        logsd = jnp.zeros((n_classes, D), jnp.float32)

    prec = jnp.exp(-2.0 * logsd)                         # (K, D)  = 1 / sd^2
    m2p = -2.0 * mean2d * prec                           # (K, D), -2 folded in
    # Batch-independent constant, handled exactly in the wrapper (no kernel work).
    c = jnp.sum(LOG_2PI + 2.0 * logsd + mean2d * mean2d * prec, axis=1)   # (K,)

    # --- tiling --------------------------------------------------------------
    if tile_d is None:
        tile_d = _default_tile_d()
    tile = min(_round_up(tile_d, _LANE), _round_up(D, _LANE))
    d_pad = _round_up(D, tile)
    nd = d_pad // tile

    b8 = _round_up(B, _SUBLANE)
    tb = min(_round_up(batch_block, _SUBLANE), b8)       # bounded VMEM per step
    b_pad = _round_up(b8, tb)
    nb = b_pad // tb

    k8 = _round_up(n_classes, _SUBLANE)                  # classes padded to 8 only

    # x: only create a padded copy when actually required (avoids an extra HBM
    # round trip of the dominant array in the aligned case).
    if (b_pad, d_pad) == (B, D):
        x_p = x2d
    else:
        x_p = jnp.zeros((b_pad, d_pad), jnp.float32).at[:B, :D].set(x2d)

    # D-major weight operands, only k8 (=8 for small n_classes) columns wide:
    # the HBM weight stream carries no 128-lane zero padding any more.
    prec_t = jnp.zeros((d_pad, k8), jnp.float32).at[:D, :n_classes].set(prec.T)
    m2p_t = jnp.zeros((d_pad, k8), jnp.float32).at[:D, :n_classes].set(m2p.T)

    acc = pl.pallas_call(
        _gaussian_prior_kernel,
        out_shape=jax.ShapeDtypeStruct((b_pad, k8), jnp.float32),
        grid_spec=pltpu.PrefetchScalarGridSpec(
            num_scalar_prefetch=0,
            grid=(nb, nd),                               # reduction axis (D) last
            in_specs=[
                pl.BlockSpec((tb, tile), lambda b, d: (b, d)),
                pl.BlockSpec((tile, k8), lambda b, d: (d, 0)),
                pl.BlockSpec((tile, k8), lambda b, d: (d, 0)),
            ],
            out_specs=pl.BlockSpec((tb, k8), lambda b, d: (b, 0)),
        ),
        compiler_params=pltpu.CompilerParams(
            dimension_semantics=("parallel", "arbitrary"),
            vmem_limit_bytes=32 * 1024 * 1024,
        ),
    )(x_p, prec_t, m2p_t)

    quad = acc[:B, :n_classes]
    p_x_given_class = -0.5 * (quad + c[None, :])
    return p_x_given_class, z_list


def _reference_forward(x, params, *, learntop=True):
    """Pure-JAX reference mirroring the PyTorch module."""
    B, C = x.shape[0], x.shape[1]
    n_classes = len(params) if params is not None else 1
    cols = []
    for i in range(n_classes):
        if learntop and params is not None:
            p = params[i]
            mean_ = p[:, :C]
            logsd_ = -1.0 + jax.nn.softplus(p[:, C:])
        else:
            mean_ = jnp.zeros_like(x[:1])
            logsd_ = jnp.zeros_like(x[:1])
        logps = -0.5 * (LOG_2PI + 2.0 * logsd_
                        + (x - mean_) ** 2 * jnp.exp(-2.0 * logsd_))
        cols.append(jnp.sum(logps.reshape(B, -1), axis=-1))
    return jnp.stack(cols, axis=-1)


if __name__ == "__main__":
    key = jax.random.PRNGKey(0)

    # --- Test 1: learntop=True, n_classes=1, D multiple of 128 ---------------
    B, C, H, W = 2, 4, 16, 16
    n_classes = 1
    kx, kp = jax.random.split(key)
    x = jax.random.normal(kx, (B, C, H, W), dtype=jnp.float32)
    # MeanVarFC params: shape [1, 2C, H, W], init 0.01 * randn (deterministic here)
    params = [
        0.01 * jax.random.normal(jax.random.fold_in(kp, i), (1, 2 * C, H, W), jnp.float32)
        for i in range(n_classes)
    ]
    z_list = []

    p1, z_out = gaussian_prior_forward(x, params, z_list, learntop=True)
    p1 = jax.block_until_ready(p1)
    exp1 = _reference_forward(x, params, learntop=True)
    assert p1.shape == (B, n_classes)
    assert jnp.allclose(p1, exp1, rtol=2e-3, atol=1e-2), (p1, exp1)
    assert z_out is z_list

    # --- Test 2: multi-class, D not a multiple of 128 (padding path) ---------
    B2, C2, H2, W2 = 2, 3, 20, 20
    n_classes2 = 3
    kx2, kp2 = jax.random.split(jax.random.fold_in(key, 7))
    x2 = jax.random.normal(kx2, (B2, C2, H2, W2), dtype=jnp.float32)
    params2 = [
        0.01 * jax.random.normal(jax.random.fold_in(kp2, i), (1, 2 * C2, H2, W2), jnp.float32)
        for i in range(n_classes2)
    ]
    p2, _ = gaussian_prior_forward(x2, params2, [], learntop=True)
    p2 = jax.block_until_ready(p2)
    exp2 = _reference_forward(x2, params2, learntop=True)
    assert p2.shape == (B2, n_classes2)
    assert jnp.allclose(p2, exp2, rtol=2e-3, atol=1e-2), (p2, exp2)

    # --- Test 3: learntop=False (IdentityFunc prior -> standard normal) ------
    p3, _ = gaussian_prior_forward(x, None, [], learntop=False)
    p3 = jax.block_until_ready(p3)
    exp3 = _reference_forward(x, None, learntop=False)
    assert jnp.allclose(p3, exp3, rtol=2e-3, atol=1e-2), (p3, exp3)

    print("KERNEL_OK")
</pallas_src>

<mosaic_0001>
module attributes {stable_mosaic.version = 11 : i64} {
  func.func @_gaussian_prior_kernel(%arg0: i32, %arg1: i32, %arg2: memref<8x1024xf32, #tpu.memory_space<vmem>>, %arg3: memref<1024x8xf32, #tpu.memory_space<vmem>>, %arg4: memref<1024x8xf32, #tpu.memory_space<vmem>>, %arg5: memref<8x8xf32, #tpu.memory_space<vmem>>) attributes {dimension_semantics = [#tpu.dimension_semantics<parallel>, #tpu.dimension_semantics<arbitrary>], iteration_bounds = array<i64: 1, 1>, scalar_prefetch = 0 : i64, scratch_operands = 0 : i64, tpu.core_type = #tpu.core_type<tc>, window_params = [{transform_indices = @transform_0, window_bounds = array<i64: 8, 1024>}, {transform_indices = @transform_1, window_bounds = array<i64: 1024, 8>}, {transform_indices = @transform_2, window_bounds = array<i64: 1024, 8>}, {transform_indices = @transform_3, window_bounds = array<i64: 8, 8>}]} {
    %c0_i32 = arith.constant 0 : i32
    %0 = arith.cmpi eq, %arg1, %c0_i32 : i32
    %1 = arith.extui %0 : i1 to i32
    %c0_i32_0 = arith.constant 0 : i32
    %2 = arith.cmpi ne, %1, %c0_i32_0 : i32
    scf.if %2 {
      %cst_11 = arith.constant 0.000000e+00 : f32
      %13 = vector.broadcast %cst_11 : f32 to vector<8x8xf32>
      %c0_12 = arith.constant 0 : index
      %c0_13 = arith.constant 0 : index
      %14 = vector.load %arg5[%c0_12, %c0_13] : memref<8x8xf32, #tpu.memory_space<vmem>>, vector<8x8xf32>
      tpu.vector_store %arg5[%c0_12, %c0_13], %13 {strides = array<i32>} : memref<8x8xf32, #tpu.memory_space<vmem>>, vector<8x8xf32>,
    } else {
    }
    %c0 = arith.constant 0 : index
    %c0_1 = arith.constant 0 : index
    %3 = vector.load %arg2[%c0, %c0_1] : memref<8x1024xf32, #tpu.memory_space<vmem>>, vector<8x1024xf32>
    %4 = arith.mulf %3, %3 : vector<8x1024xf32>
    %c0_2 = arith.constant 0 : index
    %c0_3 = arith.constant 0 : index
    %5 = vector.load %arg3[%c0_2, %c0_3] : memref<1024x8xf32, #tpu.memory_space<vmem>>, vector<1024x8xf32>
    %cst = arith.constant dense<0.000000e+00> : vector<8x8xf32>
    %6 = tpu.matmul %4, %5, %cst {dimension_numbers = #tpu.dot_dimension_numbers<[1], [0], [0], [1], [0, 0, 1, 1], [], []>} : vector<8x1024xf32>, vector<1024x8xf32>, vector<8x8xf32> -> vector<8x8xf32>
    %c0_4 = arith.constant 0 : index
    %c0_5 = arith.constant 0 : index
    %7 = vector.load %arg4[%c0_4, %c0_5] : memref<1024x8xf32, #tpu.memory_space<vmem>>, vector<1024x8xf32>
    %cst_6 = arith.constant dense<0.000000e+00> : vector<8x8xf32>
    %8 = tpu.matmul %3, %7, %cst_6 {dimension_numbers = #tpu.dot_dimension_numbers<[1], [0], [0], [1], [0, 0, 1, 1], [], []>} : vector<8x1024xf32>, vector<1024x8xf32>, vector<8x8xf32> -> vector<8x8xf32>
    %c0_7 = arith.constant 0 : index
    %c0_8 = arith.constant 0 : index
    %9 = vector.load %arg5[%c0_7, %c0_8] : memref<8x8xf32, #tpu.memory_space<vmem>>, vector<8x8xf32>
    %10 = arith.addf %6, %8 : vector<8x8xf32>
    %11 = arith.addf %9, %10 : vector<8x8xf32>
    %c0_9 = arith.constant 0 : index
    %c0_10 = arith.constant 0 : index
    %12 = vector.load %arg5[%c0_9, %c0_10] : memref<8x8xf32, #tpu.memory_space<vmem>>, vector<8x8xf32>
    tpu.vector_store %arg5[%c0_9, %c0_10], %11 {strides = array<i32>} : memref<8x8xf32, #tpu.memory_space<vmem>>, vector<8x8xf32>,
    return
  }
  func.func @transform_0(%arg0: i32, %arg1: i32) -> (i32, i32) {
    %c0_i32 = arith.constant 0 : i32
    return %arg0, %arg1 : i32, i32
  }
  func.func @transform_1(%arg0: i32, %arg1: i32) -> (i32, i32) {
    %c0_i32 = arith.constant 0 : i32
    %c0_i32_0 = arith.constant 0 : i32
    return %arg1, %c0_i32 : i32, i32
  }
  func.func @transform_2(%arg0: i32, %arg1: i32) -> (i32, i32) {
    %c0_i32 = arith.constant 0 : i32
    %c0_i32_0 = arith.constant 0 : i32
    return %arg1, %c0_i32 : i32, i32
  }
  func.func @transform_3(%arg0: i32, %arg1: i32) -> (i32, i32) {
    %c0_i32 = arith.constant 0 : i32
    %c0_i32_0 = arith.constant 0 : i32
    return %arg0, %c0_i32 : i32, i32
  }
}

</mosaic_0001>

<llo_original>
// kernel: tpu_custom_call.1
$region0: #{tpu_custom_call.1}
  #allocation0 [shape = 'u32[]', space=smem, size = 0x4, offset = 0x4, fixed_abs, tag = 'smem constant byte address 0x4 - core index']
  #allocation1 [shape = 'u32[144,128]{1,0:T(1,128)}', space=vmem, size = 0x12000, scoped, tag = 'internal scratch']
  %s0 = inlined_call_operand.vmem [shape: f32[8,1024], index: 0, kind: input, shape index: {}]
  %s1 = inlined_call_operand.vmem [shape: f32[1024,8], index: 1, kind: input, shape index: {}]
  %s2 = inlined_call_operand.vmem [shape: f32[1024,8], index: 2, kind: input, shape index: {}]
  %s3 = inlined_call_operand.hbm [shape: f32[8,8], index: 3, kind: output, shape index: {}]
  %s4 = sld [smem:[#allocation0]]
  $region26: #{tpu_custom_call.1} parent=0
    _
  %s6 = ssub.s32 1, %s4
  %s7 = scalar_select 0, %s6, %s4
  $region1: #{tpu_custom_call.1} parent=0
    #allocation2 [shape = 'u8[4096]{0}', space=vmem, size = 0x1000, scoped, tag = 'output window, operand 0, single buffered']
    #allocation3 [shape = 's32[1]{0}', space=sflag, size = 0x4, scoped, tag = 'scoped memory for tpu_custom_call.1']
    %8 = vsyncpa [#allocation3], 0
    // Predicated region
    $region2: #{tpu_custom_call.1} parent=1 // pred_check
      _
    $region3: #{tpu_custom_call.1} parent=1 // pred_check_branch
      %10 = sbr.rel (0) target = $region5
    $region4: #{tpu_custom_call.1} parent=1 // pred_region
      _
    $region5: #{tpu_custom_call.1} parent=1 // pred_fallthru
      _
    // Predicated region
    $region6: #{tpu_custom_call.1} parent=1 // pred_check
      _
    $region7: #{tpu_custom_call.1} parent=1 // pred_check_branch
      %12 = sbr.rel (0) target = $region9
    $region8: #{tpu_custom_call.1} parent=1 // pred_region
      _
    $region9: #{tpu_custom_call.1} parent=1 // pred_fallthru
      _
    // Predicated region
    $region10: #{tpu_custom_call.1} parent=1 // pred_check
      _
    $region11: #{tpu_custom_call.1} parent=1 // pred_check_branch
      %14 = sbr.rel (0) target = $region13
    $region12: #{tpu_custom_call.1} parent=1 // pred_region
      _
    $region13: #{tpu_custom_call.1} parent=1 // pred_fallthru
      _
    %p15 = scmp.eq.s32.totalorder 0, 0
    // Predicated region
    $region14: #{tpu_custom_call.1} parent=1 // pred_check
      %p16 = pneg %p15
    $region15: #{tpu_custom_call.1} parent=1 // pred_check_branch
      %18 = sbr.rel (%p16) target = $region17
    $region16: #{tpu_custom_call.1} parent=1 // pred_region
      %vm19 = vcmask 64512
      %20 = vst.msk [vmem:[#allocation2] sm:$0xff] %vm19, 0.0
    $region17: #{tpu_custom_call.1} parent=1 // pred_fallthru
      _
    %v21 = vld [vmem:[%s0] sm:$0xff]
    %v22 = vld [vmem:[%s0 + $0x8] sm:$0xff]
    %v23 = vld [vmem:[%s0 + $0x10] sm:$0xff]
    %v24 = vld [vmem:[%s0 + $0x18] sm:$0xff]
    %v25 = vld [vmem:[%s0 + $0x20] sm:$0xff]
    %v26 = vld [vmem:[%s0 + $0x28] sm:$0xff]
    %v27 = vld [vmem:[%s0 + $0x30] sm:$0xff]
    %v28 = vld [vmem:[%s0 + $0x38] sm:$0xff]
    %v29 = vmul.f32 %v21, %v21
    %v30 = vmul.f32 %v22, %v22
    %v31 = vmul.f32 %v23, %v23
    %v32 = vmul.f32 %v24, %v24
    %v33 = vmul.f32 %v25, %v25
    %v34 = vmul.f32 %v26, %v26
    %v35 = vmul.f32 %v27, %v27
    %v36 = vmul.f32 %v28, %v28
    %v37 = vld [vmem:[%s1] sm:$0xff]
    %v38 = vld [vmem:[%s1 + $0x8] sm:$0xff]
    %v39 = vld [vmem:[%s1 + $0x10] sm:$0xff]
    %v40 = vld [vmem:[%s1 + $0x18] sm:$0xff]
    %v41 = vld [vmem:[%s1 + $0x20] sm:$0xff]
    %v42 = vld [vmem:[%s1 + $0x28] sm:$0xff]
    %v43 = vld [vmem:[%s1 + $0x30] sm:$0xff]
    %v44 = vld [vmem:[%s1 + $0x38] sm:$0xff]
    %v45 = vld [vmem:[%s1 + $0x40] sm:$0xff]
    %v46 = vld [vmem:[%s1 + $0x48] sm:$0xff]
    %v47 = vld [vmem:[%s1 + $0x50] sm:$0xff]
    %v48 = vld [vmem:[%s1 + $0x58] sm:$0xff]
    %v49 = vld [vmem:[%s1 + $0x60] sm:$0xff]
    %v50 = vld [vmem:[%s1 + $0x68] sm:$0xff]
    %v51 = vld [vmem:[%s1 + $0x70] sm:$0xff]
    %v52 = vld [vmem:[%s1 + $0x78] sm:$0xff]
    %v53 = vld [vmem:[%s1 + $0x80] sm:$0xff]
    %v54 = vld [vmem:[%s1 + $0x88] sm:$0xff]
    %v55 = vld [vmem:[%s1 + $0x90] sm:$0xff]
    %v56 = vld [vmem:[%s1 + $0x98] sm:$0xff]
    %v57 = vld [vmem:[%s1 + $0xa0] sm:$0xff]
    %v58 = vld [vmem:[%s1 + $0xa8] sm:$0xff]
    %v59 = vld [vmem:[%s1 + $0xb0] sm:$0xff]
    %v60 = vld [vmem:[%s1 + $0xb8] sm:$0xff]
    %v61 = vld [vmem:[%s1 + $0xc0] sm:$0xff]
    %v62 = vld [vmem:[%s1 + $0xc8] sm:$0xff]
    %v63 = vld [vmem:[%s1 + $0xd0] sm:$0xff]
    %v64 = vld [vmem:[%s1 + $0xd8] sm:$0xff]
    %v65 = vld [vmem:[%s1 + $0xe0] sm:$0xff]
    %v66 = vld [vmem:[%s1 + $0xe8] sm:$0xff]
    %v67 = vld [vmem:[%s1 + $0xf0] sm:$0xff]
    %v68 = vld [vmem:[%s1 + $0xf8] sm:$0xff]
    %v69 = vld [vmem:[%s1 + $0x100] sm:$0xff]
    %v70 = vld [vmem:[%s1 + $0x108] sm:$0xff]
    %v71 = vld [vmem:[%s1 + $0x110] sm:$0xff]
    %v72 = vld [vmem:[%s1 + $0x118] sm:$0xff]
    %v73 = vld [vmem:[%s1 + $0x120] sm:$0xff]
    %v74 = vld [vmem:[%s1 + $0x128] sm:$0xff]
    %v75 = vld [vmem:[%s1 + $0x130] sm:$0xff]
    %v76 = vld [vmem:[%s1 + $0x138] sm:$0xff]
    %v77 = vld [vmem:[%s1 + $0x140] sm:$0xff]
    %v78 = vld [vmem:[%s1 + $0x148] sm:$0xff]
    %v79 = vld [vmem:[%s1 + $0x150] sm:$0xff]
    %v80 = vld [vmem:[%s1 + $0x158] sm:$0xff]
    %v81 = vld [vmem:[%s1 + $0x160] sm:$0xff]
    %v82 = vld [vmem:[%s1 + $0x168] sm:$0xff]
    %v83 = vld [vmem:[%s1 + $0x170] sm:$0xff]
    %v84 = vld [vmem:[%s1 + $0x178] sm:$0xff]
    %v85 = vld [vmem:[%s1 + $0x180] sm:$0xff]
    %v86 = vld [vmem:[%s1 + $0x188] sm:$0xff]
    %v87 = vld [vmem:[%s1 + $0x190] sm:$0xff]
    %v88 = vld [vmem:[%s1 + $0x198] sm:$0xff]
    %v89 = vld [vmem:[%s1 + $0x1a0] sm:$0xff]
    %v90 = vld [vmem:[%s1 + $0x1a8] sm:$0xff]
    %v91 = vld [vmem:[%s1 + $0x1b0] sm:$0xff]
    %v92 = vld [vmem:[%s1 + $0x1b8] sm:$0xff]
    %v93 = vld [vmem:[%s1 + $0x1c0] sm:$0xff]
    %v94 = vld [vmem:[%s1 + $0x1c8] sm:$0xff]
    %v95 = vld [vmem:[%s1 + $0x1d0] sm:$0xff]
    %v96 = vld [vmem:[%s1 + $0x1d8] sm:$0xff]
    %v97 = vld [vmem:[%s1 + $0x1e0] sm:$0xff]
    %v98 = vld [vmem:[%s1 + $0x1e8] sm:$0xff]
    %v99 = vld [vmem:[%s1 + $0x1f0] sm:$0xff]
    %v100 = vld [vmem:[%s1 + $0x1f8] sm:$0xff]
    %v101 = vld [vmem:[%s1 + $0x200] sm:$0xff]
    %v102 = vld [vmem:[%s1 + $0x208] sm:$0xff]
    %v103 = vld [vmem:[%s1 + $0x210] sm:$0xff]
    %v104 = vld [vmem:[%s1 + $0x218] sm:$0xff]
    %v105 = vld [vmem:[%s1 + $0x220] sm:$0xff]
    %v106 = vld [vmem:[%s1 + $0x228] sm:$0xff]
    %v107 = vld [vmem:[%s1 + $0x230] sm:$0xff]
    %v108 = vld [vmem:[%s1 + $0x238] sm:$0xff]
    %v109 = vld [vmem:[%s1 + $0x240] sm:$0xff]
    %v110 = vld [vmem:[%s1 + $0x248] sm:$0xff]
    %v111 = vld [vmem:[%s1 + $0x250] sm:$0xff]
    %v112 = vld [vmem:[%s1 + $0x258] sm:$0xff]
    %v113 = vld [vmem:[%s1 + $0x260] sm:$0xff]
    %v114 = vld [vmem:[%s1 + $0x268] sm:$0xff]
    %v115 = vld [vmem:[%s1 + $0x270] sm:$0xff]
    %v116 = vld [vmem:[%s1 + $0x278] sm:$0xff]
    %v117 = vld [vmem:[%s1 + $0x280] sm:$0xff]
    %v118 = vld [vmem:[%s1 + $0x288] sm:$0xff]
    %v119 = vld [vmem:[%s1 + $0x290] sm:$0xff]
    %v120 = vld [vmem:[%s1 + $0x298] sm:$0xff]
    %v121 = vld [vmem:[%s1 + $0x2a0] sm:$0xff]
    %v122 = vld [vmem:[%s1 + $0x2a8] sm:$0xff]
    %v123 = vld [vmem:[%s1 + $0x2b0] sm:$0xff]
    %v124 = vld [vmem:[%s1 + $0x2b8] sm:$0xff]
    %v125 = vld [vmem:[%s1 + $0x2c0] sm:$0xff]
    %v126 = vld [vmem:[%s1 + $0x2c8] sm:$0xff]
    %v127 = vld [vmem:[%s1 + $0x2d0] sm:$0xff]
    %v128 = vld [vmem:[%s1 + $0x2d8] sm:$0xff]
    %v129 = vld [vmem:[%s1 + $0x2e0] sm:$0xff]
    %v130 = vld [vmem:[%s1 + $0x2e8] sm:$0xff]
    %v131 = vld [vmem:[%s1 + $0x2f0] sm:$0xff]
    %v132 = vld [vmem:[%s1 + $0x2f8] sm:$0xff]
    %v133 = vld [vmem:[%s1 + $0x300] sm:$0xff]
    %v134 = vld [vmem:[%s1 + $0x308] sm:$0xff]
    %v135 = vld [vmem:[%s1 + $0x310] sm:$0xff]
    %v136 = vld [vmem:[%s1 + $0x318] sm:$0xff]
    %v137 = vld [vmem:[%s1 + $0x320] sm:$0xff]
    %v138 = vld [vmem:[%s1 + $0x328] sm:$0xff]
    %v139 = vld [vmem:[%s1 + $0x330] sm:$0xff]
    %v140 = vld [vmem:[%s1 + $0x338] sm:$0xff]
    %v141 = vld [vmem:[%s1 + $0x340] sm:$0xff]
    %v142 = vld [vmem:[%s1 + $0x348] sm:$0xff]
    %v143 = vld [vmem:[%s1 + $0x350] sm:$0xff]
    %v144 = vld [vmem:[%s1 + $0x358] sm:$0xff]
    %v145 = vld [vmem:[%s1 + $0x360] sm:$0xff]
    %v146 = vld [vmem:[%s1 + $0x368] sm:$0xff]
    %v147 = vld [vmem:[%s1 + $0x370] sm:$0xff]
    %v148 = vld [vmem:[%s1 + $0x378] sm:$0xff]
    %v149 = vld [vmem:[%s1 + $0x380] sm:$0xff]
    %v150 = vld [vmem:[%s1 + $0x388] sm:$0xff]
    %v151 = vld [vmem:[%s1 + $0x390] sm:$0xff]
    %v152 = vld [vmem:[%s1 + $0x398] sm:$0xff]
    %v153 = vld [vmem:[%s1 + $0x3a0] sm:$0xff]
    %v154 = vld [vmem:[%s1 + $0x3a8] sm:$0xff]
    %v155 = vld [vmem:[%s1 + $0x3b0] sm:$0xff]
    %v156 = vld [vmem:[%s1 + $0x3b8] sm:$0xff]
    %v157 = vld [vmem:[%s1 + $0x3c0] sm:$0xff]
    %v158 = vld [vmem:[%s1 + $0x3c8] sm:$0xff]
    %v159 = vld [vmem:[%s1 + $0x3d0] sm:$0xff]
    %v160 = vld [vmem:[%s1 + $0x3d8] sm:$0xff]
    %v161 = vld [vmem:[%s1 + $0x3e0] sm:$0xff]
    %v162 = vld [vmem:[%s1 + $0x3e8] sm:$0xff]
    %v163 = vld [vmem:[%s1 + $0x3f0] sm:$0xff]
    %v164 = vld [vmem:[%s1 + $0x3f8] sm:$0xff]
    %v165 = vld [vmem:[%s2] sm:$0xff]
    %v166 = vld [vmem:[%s2 + $0x8] sm:$0xff]
    %v167 = vld [vmem:[%s2 + $0x10] sm:$0xff]
    %v168 = vld [vmem:[%s2 + $0x18] sm:$0xff]
    %v169 = vld [vmem:[%s2 + $0x20] sm:$0xff]
    %v170 = vld [vmem:[%s2 + $0x28] sm:$0xff]
    %v171 = vld [vmem:[%s2 + $0x30] sm:$0xff]
    %v172 = vld [vmem:[%s2 + $0x38] sm:$0xff]
    %v173 = vld [vmem:[%s2 + $0x40] sm:$0xff]
    %v174 = vld [vmem:[%s2 + $0x48] sm:$0xff]
    %v175 = vld [vmem:[%s2 + $0x50] sm:$0xff]
    %v176 = vld [vmem:[%s2 + $0x58] sm:$0xff]
    %v177 = vld [vmem:[%s2 + $0x60] sm:$0xff]
    %v178 = vld [vmem:[%s2 + $0x68] sm:$0xff]
    %v179 = vld [vmem:[%s2 + $0x70] sm:$0xff]
    %v180 = vld [vmem:[%s2 + $0x78] sm:$0xff]
    %v181 = vld [vmem:[%s2 + $0x80] sm:$0xff]
    %v182 = vld [vmem:[%s2 + $0x88] sm:$0xff]
    %v183 = vld [vmem:[%s2 + $0x90] sm:$0xff]
    %v184 = vld [vmem:[%s2 + $0x98] sm:$0xff]
    %v185 = vld [vmem:[%s2 + $0xa0] sm:$0xff]
    %v186 = vld [vmem:[%s2 + $0xa8] sm:$0xff]
    %v187 = vld [vmem:[%s2 + $0xb0] sm:$0xff]
    %v188 = vld [vmem:[%s2 + $0xb8] sm:$0xff]
    %v189 = vld [vmem:[%s2 + $0xc0] sm:$0xff]
    %v190 = vld [vmem:[%s2 + $0xc8] sm:$0xff]
    %v191 = vld [vmem:[%s2 + $0xd0] sm:$0xff]
    %v192 = vld [vmem:[%s2 + $0xd8] sm:$0xff]
    %v193 = vld [vmem:[%s2 + $0xe0] sm:$0xff]
    %v194 = vld [vmem:[%s2 + $0xe8] sm:$0xff]
    %v195 = vld [vmem:[%s2 + $0xf0] sm:$0xff]
    %v196 = vld [vmem:[%s2 + $0xf8] sm:$0xff]
    %v197 = vld [vmem:[%s2 + $0x100] sm:$0xff]
    %v198 = vld [vmem:[%s2 + $0x108] sm:$0xff]
    %v199 = vld [vmem:[%s2 + $0x110] sm:$0xff]
    %v200 = vld [vmem:[%s2 + $0x118] sm:$0xff]
    %v201 = vld [vmem:[%s2 + $0x120] sm:$0xff]
    %v202 = vld [vmem:[%s2 + $0x128] sm:$0xff]
    %v203 = vld [vmem:[%s2 + $0x130] sm:$0xff]
    %v204 = vld [vmem:[%s2 + $0x138] sm:$0xff]
    %v205 = vld [vmem:[%s2 + $0x140] sm:$0xff]
    %v206 = vld [vmem:[%s2 + $0x148] sm:$0xff]
    %v207 = vld [vmem:[%s2 + $0x150] sm:$0xff]
    %v208 = vld [vmem:[%s2 + $0x158] sm:$0xff]
    %v209 = vld [vmem:[%s2 + $0x160] sm:$0xff]
    %v210 = vld [vmem:[%s2 + $0x168] sm:$0xff]
    %v211 = vld [vmem:[%s2 + $0x170] sm:$0xff]
    %v212 = vld [vmem:[%s2 + $0x178] sm:$0xff]
    %v213 = vld [vmem:[%s2 + $0x180] sm:$0xff]
    %v214 = vld [vmem:[%s2 + $0x188] sm:$0xff]
    %v215 = vld [vmem:[%s2 + $0x190] sm:$0xff]
    %v216 = vld [vmem:[%s2 + $0x198] sm:$0xff]
    %v217 = vld [vmem:[%s2 + $0x1a0] sm:$0xff]
    %v218 = vld [vmem:[%s2 + $0x1a8] sm:$0xff]
    %v219 = vld [vmem:[%s2 + $0x1b0] sm:$0xff]
    %v220 = vld [vmem:[%s2 + $0x1b8] sm:$0xff]
    %v221 = vld [vmem:[%s2 + $0x1c0] sm:$0xff]
    %v222 = vld [vmem:[%s2 + $0x1c8] sm:$0xff]
    %v223 = vld [vmem:[%s2 + $0x1d0] sm:$0xff]
    %v224 = vld [vmem:[%s2 + $0x1d8] sm:$0xff]
    %v225 = vld [vmem:[%s2 + $0x1e0] sm:$0xff]
    %v226 = vld [vmem:[%s2 + $0x1e8] sm:$0xff]
    %v227 = vld [vmem:[%s2 + $0x1f0] sm:$0xff]
    %v228 = vld [vmem:[%s2 + $0x1f8] sm:$0xff]
    %v229 = vld [vmem:[%s2 + $0x200] sm:$0xff]
    %v230 = vld [vmem:[%s2 + $0x208] sm:$0xff]
    %v231 = vld [vmem:[%s2 + $0x210] sm:$0xff]
    %v232 = vld [vmem:[%s2 + $0x218] sm:$0xff]
    %v233 = vld [vmem:[%s2 + $0x220] sm:$0xff]
    %v234 = vld [vmem:[%s2 + $0x228] sm:$0xff]
    %v235 = vld [vmem:[%s2 + $0x230] sm:$0xff]
    %v236 = vld [vmem:[%s2 + $0x238] sm:$0xff]
    %v237 = vld [vmem:[%s2 + $0x240] sm:$0xff]
    %v238 = vld [vmem:[%s2 + $0x248] sm:$0xff]
    %v239 = vld [vmem:[%s2 + $0x250] sm:$0xff]
    %v240 = vld [vmem:[%s2 + $0x258] sm:$0xff]
    %v241 = vld [vmem:[%s2 + $0x260] sm:$0xff]
    %v242 = vld [vmem:[%s2 + $0x268] sm:$0xff]
    %v243 = vld [vmem:[%s2 + $0x270] sm:$0xff]
    %v244 = vld [vmem:[%s2 + $0x278] sm:$0xff]
    %v245 = vld [vmem:[%s2 + $0x280] sm:$0xff]
    %v246 = vld [vmem:[%s2 + $0x288] sm:$0xff]
    %v247 = vld [vmem:[%s2 + $0x290] sm:$0xff]
    %v248 = vld [vmem:[%s2 + $0x298] sm:$0xff]
    %v249 = vld [vmem:[%s2 + $0x2a0] sm:$0xff]
    %v250 = vld [vmem:[%s2 + $0x2a8] sm:$0xff]
    %v251 = vld [vmem:[%s2 + $0x2b0] sm:$0xff]
    %v252 = vld [vmem:[%s2 + $0x2b8] sm:$0xff]
    %v253 = vld [vmem:[%s2 + $0x2c0] sm:$0xff]
    %v254 = vld [vmem:[%s2 + $0x2c8] sm:$0xff]
    %v255 = vld [vmem:[%s2 + $0x2d0] sm:$0xff]
    %v256 = vld [vmem:[%s2 + $0x2d8] sm:$0xff]
    %v257 = vld [vmem:[%s2 + $0x2e0] sm:$0xff]
    %v258 = vld [vmem:[%s2 + $0x2e8] sm:$0xff]
    %v259 = vld [vmem:[%s2 + $0x2f0] sm:$0xff]
    %v260 = vld [vmem:[%s2 + $0x2f8] sm:$0xff]
    %v261 = vld [vmem:[%s2 + $0x300] sm:$0xff]
    %v262 = vld [vmem:[%s2 + $0x308] sm:$0xff]
    %v263 = vld [vmem:[%s2 + $0x310] sm:$0xff]
    %v264 = vld [vmem:[%s2 + $0x318] sm:$0xff]
    %v265 = vld [vmem:[%s2 + $0x320] sm:$0xff]
    %v266 = vld [vmem:[%s2 + $0x328] sm:$0xff]
    %v267 = vld [vmem:[%s2 + $0x330] sm:$0xff]
    %v268 = vld [vmem:[%s2 + $0x338] sm:$0xff]
    %v269 = vld [vmem:[%s2 + $0x340] sm:$0xff]
    %v270 = vld [vmem:[%s2 + $0x348] sm:$0xff]
    %v271 = vld [vmem:[%s2 + $0x350] sm:$0xff]
    %v272 = vld [vmem:[%s2 + $0x358] sm:$0xff]
    %v273 = vld [vmem:[%s2 + $0x360] sm:$0xff]
    %v274 = vld [vmem:[%s2 + $0x368] sm:$0xff]
    %v275 = vld [vmem:[%s2 + $0x370] sm:$0xff]
    %v276 = vld [vmem:[%s2 + $0x378] sm:$0xff]
    %v277 = vld [vmem:[%s2 + $0x380] sm:$0xff]
    %v278 = vld [vmem:[%s2 + $0x388] sm:$0xff]
    %v279 = vld [vmem:[%s2 + $0x390] sm:$0xff]
    %v280 = vld [vmem:[%s2 + $0x398] sm:$0xff]
    %v281 = vld [vmem:[%s2 + $0x3a0] sm:$0xff]
    %v282 = vld [vmem:[%s2 + $0x3a8] sm:$0xff]
    %v283 = vld [vmem:[%s2 + $0x3b0] sm:$0xff]
    %v284 = vld [vmem:[%s2 + $0x3b8] sm:$0xff]
    %v285 = vld [vmem:[%s2 + $0x3c0] sm:$0xff]
    %v286 = vld [vmem:[%s2 + $0x3c8] sm:$0xff]
    %v287 = vld [vmem:[%s2 + $0x3d0] sm:$0xff]
    %v288 = vld [vmem:[%s2 + $0x3d8] sm:$0xff]
    %v289 = vld [vmem:[%s2 + $0x3e0] sm:$0xff]
    %v290 = vld [vmem:[%s2 + $0x3e8] sm:$0xff]
    %v291 = vld [vmem:[%s2 + $0x3f0] sm:$0xff]
    %v292 = vld [vmem:[%s2 + $0x3f8] sm:$0xff]
    %293 = vmatprep.subr.mxu0 0.0
    %294 = vmatpush1.msra.mxu0 %v165
    %295 = vmatprep.subr.mxu0 0.0
    %296 = vmatpush1.msra.mxu0 %v166
    %297 = vmatprep.subr.mxu0 0.0
    %298 = vmatpush1.msra.mxu0 %v167
    %299 = vmatprep.subr.mxu0 0.0
    %300 = vmatpush1.msra.mxu0 %v168
    %301 = vmatprep.subr.mxu0 0.0
    %302 = vmatpush1.msra.mxu0 %v169
    %303 = vmatprep.subr.mxu0 0.0
    %304 = vmatpush1.msra.mxu0 %v170
    %305 = vmatprep.subr.mxu0 0.0
    %306 = vmatpush1.msra.mxu0 %v171
    %307 = vmatprep.subr.mxu0 0.0
    %308 = vmatpush1.msra.mxu0 %v172
    %309 = vmatprep.subr.mxu0 0.0
    %310 = vmatpush1.msra.mxu0 %v173
    %311 = vmatprep.subr.mxu0 0.0
    %312 = vmatpush1.msra.mxu0 %v174
    %313 = vmatprep.subr.mxu0 0.0
    %314 = vmatpush1.msra.mxu0 %v175
    %315 = vmatprep.subr.mxu0 0.0
    %316 = vmatpush1.msra.mxu0 %v176
    %317 = vmatprep.subr.mxu0 0.0
    %318 = vmatpush1.msra.mxu0 %v177
    %319 = vmatprep.subr.mxu0 0.0
    %320 = vmatpush1.msra.mxu0 %v178
    %321 = vmatprep.subr.mxu0 0.0
    %322 = vmatpush1.msra.mxu0 %v179
    %323 = vmatprep.subr.mxu0 0.0
    %324 = vmatpush1.msra.mxu0 %v180
    %325 = vmatprep.subr.mxu0 0.0
    %326 = vmatpush1.msra.mxu0 %v181
    %327 = vmatprep.subr.mxu0 0.0
    %328 = vmatpush1.msra.mxu0 %v182
    %329 = vmatprep.subr.mxu0 0.0
    %330 = vmatpush1.msra.mxu0 %v183
    %331 = vmatprep.subr.mxu0 0.0
    %332 = vmatpush1.msra.mxu0 %v184
    %333 = vmatprep.subr.mxu0 0.0
    %334 = vmatpush1.msra.mxu0 %v185
    %335 = vmatprep.subr.mxu0 0.0
    %336 = vmatpush1.msra.mxu0 %v186
    %337 = vmatprep.subr.mxu0 0.0
    %338 = vmatpush1.msra.mxu0 %v187
    %339 = vmatprep.subr.mxu0 0.0
    %340 = vmatpush1.msra.mxu0 %v188
    %341 = vmatprep.subr.mxu0 0.0
    %342 = vmatpush1.msra.mxu0 %v189
    %343 = vmatprep.subr.mxu0 0.0
    %344 = vmatpush1.msra.mxu0 %v190
    %345 = vmatprep.subr.mxu0 0.0
    %346 = vmatpush1.msra.mxu0 %v191
    %347 = vmatprep.subr.mxu0 0.0
    %348 = vmatpush1.msra.mxu0 %v192
    %349 = vmatprep.subr.mxu0 0.0
    %350 = vmatpush1.msra.mxu0 %v193
    %351 = vmatprep.subr.mxu0 0.0
    %352 = vmatpush1.msra.mxu0 %v194
    %353 = vmatprep.subr.mxu0 0.0
    %354 = vmatpush1.msra.mxu0 %v195
    %355 = vmatprep.subr.mxu0 0.0
    %356 = vmatpush1.msra.mxu0 %v196
    %357 = vmatprep.mubr.f32.mxu0 %v22
    %358 = vmatmul.mubr.f32.gmra.mrb[0].mxu0 %v21
    %v359 = vpop.f32.mrb[0].mxu0
    %v360 = vadd.f32 0.0, %v359
    %v361 = vpop.f32.mrb[0].mxu0
    %362 = vdwg.mxu0
    %363 = vmatprep.subr.mxu0 0.0
    %364 = vmatpush1.msra.mxu0 %v197
    %365 = vmatprep.subr.mxu0 0.0
    %366 = vmatpush1.msra.mxu0 %v198
    %367 = vmatprep.subr.mxu0 0.0
    %368 = vmatpush1.msra.mxu0 %v199
    %369 = vmatprep.subr.mxu0 0.0
    %370 = vmatpush1.msra.mxu0 %v200
    %371 = vmatprep.subr.mxu0 0.0
    %372 = vmatpush1.msra.mxu0 %v201
    %373 = vmatprep.subr.mxu0 0.0
    %374 = vmatpush1.msra.mxu0 %v202
    %375 = vmatprep.subr.mxu0 0.0
    %376 = vmatpush1.msra.mxu0 %v203
    %377 = vmatprep.subr.mxu0 0.0
    %378 = vmatpush1.msra.mxu0 %v204
    %379 = vmatprep.subr.mxu0 0.0
    %380 = vmatpush1.msra.mxu0 %v205
    %381 = vmatprep.subr.mxu0 0.0
    %382 = vmatpush1.msra.mxu0 %v206
    %383 = vmatprep.subr.mxu0 0.0
    %384 = vmatpush1.msra.mxu0 %v207
    %385 = vmatprep.subr.mxu0 0.0
    %386 = vmatpush1.msra.mxu0 %v208
    %387 = vmatprep.subr.mxu0 0.0
    %388 = vmatpush1.msra.mxu0 %v209
    %389 = vmatprep.subr.mxu0 0.0
    %390 = vmatpush1.msra.mxu0 %v210
    %391 = vmatprep.subr.mxu0 0.0
    %392 = vmatpush1.msra.mxu0 %v211
    %393 = vmatprep.subr.mxu0 0.0
    %394 = vmatpush1.msra.mxu0 %v212
    %395 = vmatprep.subr.mxu0 0.0
    %396 = vmatpush1.msra.mxu0 %v213
    %397 = vmatprep.subr.mxu0 0.0
    %398 = vmatpush1.msra.mxu0 %v214
    %399 = vmatprep.subr.mxu0 0.0
    %400 = vmatpush1.msra.mxu0 %v215
    %401 = vmatprep.subr.mxu0 0.0
    %402 = vmatpush1.msra.mxu0 %v216
    %403 = vmatprep.subr.mxu0 0.0
    %404 = vmatpush1.msra.mxu0 %v217
    %405 = vmatprep.subr.mxu0 0.0
    %406 = vmatpush1.msra.mxu0 %v218
    %407 = vmatprep.subr.mxu0 0.0
    %408 = vmatpush1.msra.mxu0 %v219
    %409 = vmatprep.subr.mxu0 0.0
    %410 = vmatpush1.msra.mxu0 %v220
    %411 = vmatprep.subr.mxu0 0.0
    %412 = vmatpush1.msra.mxu0 %v221
    %413 = vmatprep.subr.mxu0 0.0
    %414 = vmatpush1.msra.mxu0 %v222
    %415 = vmatprep.subr.mxu0 0.0
    %416 = vmatpush1.msra.mxu0 %v223
    %417 = vmatprep.subr.mxu0 0.0
    %418 = vmatpush1.msra.mxu0 %v224
    %419 = vmatprep.subr.mxu0 0.0
    %420 = vmatpush1.msra.mxu0 %v225
    %421 = vmatprep.subr.mxu0 0.0
    %422 = vmatpush1.msra.mxu0 %v226
    %423 = vmatprep.subr.mxu0 0.0
    %424 = vmatpush1.msra.mxu0 %v227
    %425 = vmatprep.subr.mxu0 0.0
    %426 = vmatpush1.msra.mxu0 %v228
    %427 = vmatprep.mubr.f32.mxu0 %v24
    %428 = vmatmul.mubr.f32.gmra.mrb[0].mxu0 %v23
    %v429 = vpop.f32.mrb[0].mxu0
    %v430 = vadd.f32 %v360, %v429
    %v431 = vpop.f32.mrb[0].mxu0
    %432 = vdwg.mxu0
    %433 = vmatprep.subr.mxu0 0.0
    %434 = vmatpush1.msra.mxu0 %v229
    %435 = vmatprep.subr.mxu0 0.0
    %436 = vmatpush1.msra.mxu0 %v230
    %437 = vmatprep.subr.mxu0 0.0
    %438 = vmatpush1.msra.mxu0 %v231
    %439 = vmatprep.subr.mxu0 0.0
    %440 = vmatpush1.msra.mxu0 %v232
    %441 = vmatprep.subr.mxu0 0.0
    %442 = vmatpush1.msra.mxu0 %v233
    %443 = vmatprep.subr.mxu0 0.0
    %444 = vmatpush1.msra.mxu0 %v234
    %445 = vmatprep.subr.mxu0 0.0
    %446 = vmatpush1.msra.mxu0 %v235
    %447 = vmatprep.subr.mxu0 0.0
    %448 = vmatpush1.msra.mxu0 %v236
    %449 = vmatprep.subr.mxu0 0.0
    %450 = vmatpush1.msra.mxu0 %v237
    %451 = vmatprep.subr.mxu0 0.0
    %452 = vmatpush1.msra.mxu0 %v238
    %453 = vmatprep.subr.mxu0 0.0
    %454 = vmatpush1.msra.mxu0 %v239
    %455 = vmatprep.subr.mxu0 0.0
    %456 = vmatpush1.msra.mxu0 %v240
    %457 = vmatprep.subr.mxu0 0.0
    %458 = vmatpush1.msra.mxu0 %v241
    %459 = vmatprep.subr.mxu0 0.0
    %460 = vmatpush1.msra.mxu0 %v242
    %461 = vmatprep.subr.mxu0 0.0
    %462 = vmatpush1.msra.mxu0 %v243
    %463 = vmatprep.subr.mxu0 0.0
    %464 = vmatpush1.msra.mxu0 %v244
    %465 = vmatprep.subr.mxu0 0.0
    %466 = vmatpush1.msra.mxu0 %v245
    %467 = vmatprep.subr.mxu0 0.0
    %468 = vmatpush1.msra.mxu0 %v246
    %469 = vmatprep.subr.mxu0 0.0
    %470 = vmatpush1.msra.mxu0 %v247
    %471 = vmatprep.subr.mxu0 0.0
    %472 = vmatpush1.msra.mxu0 %v248
    %473 = vmatprep.subr.mxu0 0.0
    %474 = vmatpush1.msra.mxu0 %v249
    %475 = vmatprep.subr.mxu0 0.0
    %476 = vmatpush1.msra.mxu0 %v250
    %477 = vmatprep.subr.mxu0 0.0
    %478 = vmatpush1.msra.mxu0 %v251
    %479 = vmatprep.subr.mxu0 0.0
    %480 = vmatpush1.msra.mxu0 %v252
    %481 = vmatprep.subr.mxu0 0.0
    %482 = vmatpush1.msra.mxu0 %v253
    %483 = vmatprep.subr.mxu0 0.0
    %484 = vmatpush1.msra.mxu0 %v254
    %485 = vmatprep.subr.mxu0 0.0
    %486 = vmatpush1.msra.mxu0 %v255
    %487 = vmatprep.subr.mxu0 0.0
    %488 = vmatpush1.msra.mxu0 %v256
    %489 = vmatprep.subr.mxu0 0.0
    %490 = vmatpush1.msra.mxu0 %v257
    %491 = vmatprep.subr.mxu0 0.0
    %492 = vmatpush1.msra.mxu0 %v258
    %493 = vmatprep.subr.mxu0 0.0
    %494 = vmatpush1.msra.mxu0 %v259
    %495 = vmatprep.subr.mxu0 0.0
    %496 = vmatpush1.msra.mxu0 %v260
    %497 = vmatprep.mubr.f32.mxu0 %v26
    %498 = vmatmul.mubr.f32.gmra.mrb[0].mxu0 %v25
    %v499 = vpop.f32.mrb[0].mxu0
    %v500 = vadd.f32 %v430, %v499
    %v501 = vpop.f32.mrb[0].mxu0
    %502 = vdwg.mxu0
    %503 = vmatprep.subr.mxu0 0.0
    %504 = vmatpush1.msra.mxu0 %v261
    %505 = vmatprep.subr.mxu0 0.0
    %506 = vmatpush1.msra.mxu0 %v262
    %507 = vmatprep.subr.mxu0 0.0
    %508 = vmatpush1.msra.mxu0 %v263
    %509 = vmatprep.subr.mxu0 0.0
    %510 = vmatpush1.msra.mxu0 %v264
    %511 = vmatprep.subr.mxu0 0.0
    %512 = vmatpush1.msra.mxu0 %v265
    %513 = vmatprep.subr.mxu0 0.0
    %514 = vmatpush1.msra.mxu0 %v266
    %515 = vmatprep.subr.mxu0 0.0
    %516 = vmatpush1.msra.mxu0 %v267
    %517 = vmatprep.subr.mxu0 0.0
    %518 = vmatpush1.msra.mxu0 %v268
    %519 = vmatprep.subr.mxu0 0.0
    %520 = vmatpush1.msra.mxu0 %v269
    %521 = vmatprep.subr.mxu0 0.0
    %522 = vmatpush1.msra.mxu0 %v270
    %523 = vmatprep.subr.mxu0 0.0
    %524 = vmatpush1.msra.mxu0 %v271
    %525 = vmatprep.subr.mxu0 0.0
    %526 = vmatpush1.msra.mxu0 %v272
    %527 = vmatprep.subr.mxu0 0.0
    %528 = vmatpush1.msra.mxu0 %v273
    %529 = vmatprep.subr.mxu0 0.0
    %530 = vmatpush1.msra.mxu0 %v274
    %531 = vmatprep.subr.mxu0 0.0
    %532 = vmatpush1.msra.mxu0 %v275
    %533 = vmatprep.subr.mxu0 0.0
    %534 = vmatpush1.msra.mxu0 %v276
    %535 = vmatprep.subr.mxu0 0.0
    %536 = vmatpush1.msra.mxu0 %v277
    %537 = vmatprep.subr.mxu0 0.0
    %538 = vmatpush1.msra.mxu0 %v278
    %539 = vmatprep.subr.mxu0 0.0
    %540 = vmatpush1.msra.mxu0 %v279
    %541 = vmatprep.subr.mxu0 0.0
    %542 = vmatpush1.msra.mxu0 %v280
    %543 = vmatprep.subr.mxu0 0.0
    %544 = vmatpush1.msra.mxu0 %v281
    %545 = vmatprep.subr.mxu0 0.0
    %546 = vmatpush1.msra.mxu0 %v282
    %547 = vmatprep.subr.mxu0 0.0
    %548 = vmatpush1.msra.mxu0 %v283
    %549 = vmatprep.subr.mxu0 0.0
    %550 = vmatpush1.msra.mxu0 %v284
    %551 = vmatprep.subr.mxu0 0.0
    %552 = vmatpush1.msra.mxu0 %v285
    %553 = vmatprep.subr.mxu0 0.0
    %554 = vmatpush1.msra.mxu0 %v286
    %555 = vmatprep.subr.mxu0 0.0
    %556 = vmatpush1.msra.mxu0 %v287
    %557 = vmatprep.subr.mxu0 0.0
    %558 = vmatpush1.msra.mxu0 %v288
    %559 = vmatprep.subr.mxu0 0.0
    %560 = vmatpush1.msra.mxu0 %v289
    %561 = vmatprep.subr.mxu0 0.0
    %562 = vmatpush1.msra.mxu0 %v290
    %563 = vmatprep.subr.mxu0 0.0
    %564 = vmatpush1.msra.mxu0 %v291
    %565 = vmatprep.subr.mxu0 0.0
    %566 = vmatpush1.msra.mxu0 %v292
    %567 = vmatprep.mubr.f32.mxu0 %v28
    %568 = vmatmul.mubr.f32.gmra.mrb[0].mxu0 %v27
    %v569 = vpop.f32.mrb[0].mxu0
    %v570 = vadd.f32 %v500, %v569
    %v571 = vpop.f32.mrb[0].mxu0
    %572 = vdwg.mxu0
    %v573 = vld [vmem:[#allocation2] sm:$0xff]
    %574 = vmatprep.subr.mxu0 0.0
    %575 = vmatpush1.msra.mxu0 %v37
    %576 = vmatprep.subr.mxu0 0.0
    %577 = vmatpush1.msra.mxu0 %v38
    %578 = vmatprep.subr.mxu0 0.0
    %579 = vmatpush1.msra.mxu0 %v39
    %580 = vmatprep.subr.mxu0 0.0
    %581 = vmatpush1.msra.mxu0 %v40
    %582 = vmatprep.subr.mxu0 0.0
    %583 = vmatpush1.msra.mxu0 %v41
    %584 = vmatprep.subr.mxu0 0.0
    %585 = vmatpush1.msra.mxu0 %v42
    %586 = vmatprep.subr.mxu0 0.0
    %587 = vmatpush1.msra.mxu0 %v43
    %588 = vmatprep.subr.mxu0 0.0
    %589 = vmatpush1.msra.mxu0 %v44
    %590 = vmatprep.subr.mxu0 0.0
    %591 = vmatpush1.msra.mxu0 %v45
    %592 = vmatprep.subr.mxu0 0.0
    %593 = vmatpush1.msra.mxu0 %v46
    %594 = vmatprep.subr.mxu0 0.0
    %595 = vmatpush1.msra.mxu0 %v47
    %596 = vmatprep.subr.mxu0 0.0
    %597 = vmatpush1.msra.mxu0 %v48
    %598 = vmatprep.subr.mxu0 0.0
    %599 = vmatpush1.msra.mxu0 %v49
    %600 = vmatprep.subr.mxu0 0.0
    %601 = vmatpush1.msra.mxu0 %v50
    %602 = vmatprep.subr.mxu0 0.0
    %603 = vmatpush1.msra.mxu0 %v51
    %604 = vmatprep.subr.mxu0 0.0
    %605 = vmatpush1.msra.mxu0 %v52
    %606 = vmatprep.subr.mxu0 0.0
    %607 = vmatpush1.msra.mxu0 %v53
    %608 = vmatprep.subr.mxu0 0.0
    %609 = vmatpush1.msra.mxu0 %v54
    %610 = vmatprep.subr.mxu0 0.0
    %611 = vmatpush1.msra.mxu0 %v55
    %612 = vmatprep.subr.mxu0 0.0
    %613 = vmatpush1.msra.mxu0 %v56
    %614 = vmatprep.subr.mxu0 0.0
    %615 = vmatpush1.msra.mxu0 %v57
    %616 = vmatprep.subr.mxu0 0.0
    %617 = vmatpush1.msra.mxu0 %v58
    %618 = vmatprep.subr.mxu0 0.0
    %619 = vmatpush1.msra.mxu0 %v59
    %620 = vmatprep.subr.mxu0 0.0
    %621 = vmatpush1.msra.mxu0 %v60
    %622 = vmatprep.subr.mxu0 0.0
    %623 = vmatpush1.msra.mxu0 %v61
    %624 = vmatprep.subr.mxu0 0.0
    %625 = vmatpush1.msra.mxu0 %v62
    %626 = vmatprep.subr.mxu0 0.0
    %627 = vmatpush1.msra.mxu0 %v63
    %628 = vmatprep.subr.mxu0 0.0
    %629 = vmatpush1.msra.mxu0 %v64
    %630 = vmatprep.subr.mxu0 0.0
    %631 = vmatpush1.msra.mxu0 %v65
    %632 = vmatprep.subr.mxu0 0.0
    %633 = vmatpush1.msra.mxu0 %v66
    %634 = vmatprep.subr.mxu0 0.0
    %635 = vmatpush1.msra.mxu0 %v67
    %636 = vmatprep.subr.mxu0 0.0
    %637 = vmatpush1.msra.mxu0 %v68
    %638 = vmatprep.mubr.f32.mxu0 %v30
    %639 = vmatmul.mubr.f32.gmra.mrb[0].mxu0 %v29
    %v640 = vpop.f32.mrb[0].mxu0
    %v641 = vadd.f32 %v570, %v640
    %v642 = vpop.f32.mrb[0].mxu0
    %643 = vdwg.mxu0
    %644 = vmatprep.subr.mxu0 0.0
    %645 = vmatpush1.msra.mxu0 %v69
    %646 = vmatprep.subr.mxu0 0.0
    %647 = vmatpush1.msra.mxu0 %v70
    %648 = vmatprep.subr.mxu0 0.0
    %649 = vmatpush1.msra.mxu0 %v71
    %650 = vmatprep.subr.mxu0 0.0
    %651 = vmatpush1.msra.mxu0 %v72
    %652 = vmatprep.subr.mxu0 0.0
    %653 = vmatpush1.msra.mxu0 %v73
    %654 = vmatprep.subr.mxu0 0.0
    %655 = vmatpush1.msra.mxu0 %v74
    %656 = vmatprep.subr.mxu0 0.0
    %657 = vmatpush1.msra.mxu0 %v75
    %658 = vmatprep.subr.mxu0 0.0
    %659 = vmatpush1.msra.mxu0 %v76
    %660 = vmatprep.subr.mxu0 0.0
    %661 = vmatpush1.msra.mxu0 %v77
    %662 = vmatprep.subr.mxu0 0.0
    %663 = vmatpush1.msra.mxu0 %v78
    %664 = vmatprep.subr.mxu0 0.0
    %665 = vmatpush1.msra.mxu0 %v79
    %666 = vmatprep.subr.mxu0 0.0
    %667 = vmatpush1.msra.mxu0 %v80
    %668 = vmatprep.subr.mxu0 0.0
    %669 = vmatpush1.msra.mxu0 %v81
    %670 = vmatprep.subr.mxu0 0.0
    %671 = vmatpush1.msra.mxu0 %v82
    %672 = vmatprep.subr.mxu0 0.0
    %673 = vmatpush1.msra.mxu0 %v83
    %674 = vmatprep.subr.mxu0 0.0
    %675 = vmatpush1.msra.mxu0 %v84
    %676 = vmatprep.subr.mxu0 0.0
    %677 = vmatpush1.msra.mxu0 %v85
    %678 = vmatprep.subr.mxu0 0.0
    %679 = vmatpush1.msra.mxu0 %v86
    %680 = vmatprep.subr.mxu0 0.0
    %681 = vmatpush1.msra.mxu0 %v87
    %682 = vmatprep.subr.mxu0 0.0
    %683 = vmatpush1.msra.mxu0 %v88
    %684 = vmatprep.subr.mxu0 0.0
    %685 = vmatpush1.msra.mxu0 %v89
    %686 = vmatprep.subr.mxu0 0.0
    %687 = vmatpush1.msra.mxu0 %v90
    %688 = vmatprep.subr.mxu0 0.0
    %689 = vmatpush1.msra.mxu0 %v91
    %690 = vmatprep.subr.mxu0 0.0
    %691 = vmatpush1.msra.mxu0 %v92
    %692 = vmatprep.subr.mxu0 0.0
    %693 = vmatpush1.msra.mxu0 %v93
    %694 = vmatprep.subr.mxu0 0.0
    %695 = vmatpush1.msra.mxu0 %v94
    %696 = vmatprep.subr.mxu0 0.0
    %697 = vmatpush1.msra.mxu0 %v95
    %698 = vmatprep.subr.mxu0 0.0
    %699 = vmatpush1.msra.mxu0 %v96
    %700 = vmatprep.subr.mxu0 0.0
    %701 = vmatpush1.msra.mxu0 %v97
    %702 = vmatprep.subr.mxu0 0.0
    %703 = vmatpush1.msra.mxu0 %v98
    %704 = vmatprep.subr.mxu0 0.0
    %705 = vmatpush1.msra.mxu0 %v99
    %706 = vmatprep.subr.mxu0 0.0
    %707 = vmatpush1.msra.mxu0 %v100
    %708 = vmatprep.mubr.f32.mxu0 %v32
    %709 = vmatmul.mubr.f32.gmra.mrb[0].mxu0 %v31
    %v710 = vpop.f32.mrb[0].mxu0
    %v711 = vadd.f32 %v641, %v710
    %v712 = vpop.f32.mrb[0].mxu0
    %713 = vdwg.mxu0
    %714 = vmatprep.subr.mxu0 0.0
    %715 = vmatpush1.msra.mxu0 %v101
    %716 = vmatprep.subr.mxu0 0.0
    %717 = vmatpush1.msra.mxu0 %v102
    %718 = vmatprep.subr.mxu0 0.0
    %719 = vmatpush1.msra.mxu0 %v103
    %720 = vmatprep.subr.mxu0 0.0
    %721 = vmatpush1.msra.mxu0 %v104
    %722 = vmatprep.subr.mxu0 0.0
    %723 = vmatpush1.msra.mxu0 %v105
    %724 = vmatprep.subr.mxu0 0.0
    %725 = vmatpush1.msra.mxu0 %v106
    %726 = vmatprep.subr.mxu0 0.0
    %727 = vmatpush1.msra.mxu0 %v107
    %728 = vmatprep.subr.mxu0 0.0
    %729 = vmatpush1.msra.mxu0 %v108
    %730 = vmatprep.subr.mxu0 0.0
    %731 = vmatpush1.msra.mxu0 %v109
    %732 = vmatprep.subr.mxu0 0.0
    %733 = vmatpush1.msra.mxu0 %v110
    %734 = vmatprep.subr.mxu0 0.0
    %735 = vmatpush1.msra.mxu0 %v111
    %736 = vmatprep.subr.mxu0 0.0
    %737 = vmatpush1.msra.mxu0 %v112
    %738 = vmatprep.subr.mxu0 0.0
    %739 = vmatpush1.msra.mxu0 %v113
    %740 = vmatprep.subr.mxu0 0.0
    %741 = vmatpush1.msra.mxu0 %v114
    %742 = vmatprep.subr.mxu0 0.0
    %743 = vmatpush1.msra.mxu0 %v115
    %744 = vmatprep.subr.mxu0 0.0
    %745 = vmatpush1.msra.mxu0 %v116
    %746 = vmatprep.subr.mxu0 0.0
    %747 = vmatpush1.msra.mxu0 %v117
    %748 = vmatprep.subr.mxu0 0.0
    %749 = vmatpush1.msra.mxu0 %v118
    %750 = vmatprep.subr.mxu0 0.0
    %751 = vmatpush1.msra.mxu0 %v119
    %752 = vmatprep.subr.mxu0 0.0
    %753 = vmatpush1.msra.mxu0 %v120
    %754 = vmatprep.subr.mxu0 0.0
    %755 = vmatpush1.msra.mxu0 %v121
    %756 = vmatprep.subr.mxu0 0.0
    %757 = vmatpush1.msra.mxu0 %v122
    %758 = vmatprep.subr.mxu0 0.0
    %759 = vmatpush1.msra.mxu0 %v123
    %760 = vmatprep.subr.mxu0 0.0
    %761 = vmatpush1.msra.mxu0 %v124
    %762 = vmatprep.subr.mxu0 0.0
    %763 = vmatpush1.msra.mxu0 %v125
    %764 = vmatprep.subr.mxu0 0.0
    %765 = vmatpush1.msra.mxu0 %v126
    %766 = vmatprep.subr.mxu0 0.0
    %767 = vmatpush1.msra.mxu0 %v127
    %768 = vmatprep.subr.mxu0 0.0
    %769 = vmatpush1.msra.mxu0 %v128
    %770 = vmatprep.subr.mxu0 0.0
    %771 = vmatpush1.msra.mxu0 %v129
    %772 = vmatprep.subr.mxu0 0.0
    %773 = vmatpush1.msra.mxu0 %v130
    %774 = vmatprep.subr.mxu0 0.0
    %775 = vmatpush1.msra.mxu0 %v131
    %776 = vmatprep.subr.mxu0 0.0
    %777 = vmatpush1.msra.mxu0 %v132
    %778 = vmatprep.mubr.f32.mxu0 %v34
    %779 = vmatmul.mubr.f32.gmra.mrb[0].mxu0 %v33
    %v780 = vpop.f32.mrb[0].mxu0
    %v781 = vadd.f32 %v711, %v780
    %v782 = vpop.f32.mrb[0].mxu0
    %783 = vdwg.mxu0
    %784 = vmatprep.subr.mxu0 0.0
    %785 = vmatpush1.msra.mxu0 %v133
    %786 = vmatprep.subr.mxu0 0.0
    %787 = vmatpush1.msra.mxu0 %v134
    %788 = vmatprep.subr.mxu0 0.0
    %789 = vmatpush1.msra.mxu0 %v135
    %790 = vmatprep.subr.mxu0 0.0
    %791 = vmatpush1.msra.mxu0 %v136
    %792 = vmatprep.subr.mxu0 0.0
    %793 = vmatpush1.msra.mxu0 %v137
    %794 = vmatprep.subr.mxu0 0.0
    %795 = vmatpush1.msra.mxu0 %v138
    %796 = vmatprep.subr.mxu0 0.0
    %797 = vmatpush1.msra.mxu0 %v139
    %798 = vmatprep.subr.mxu0 0.0
    %799 = vmatpush1.msra.mxu0 %v140
    %800 = vmatprep.subr.mxu0 0.0
    %801 = vmatpush1.msra.mxu0 %v141
    %802 = vmatprep.subr.mxu0 0.0
    %803 = vmatpush1.msra.mxu0 %v142
    %804 = vmatprep.subr.mxu0 0.0
    %805 = vmatpush1.msra.mxu0 %v143
    %806 = vmatprep.subr.mxu0 0.0
    %807 = vmatpush1.msra.mxu0 %v144
    %808 = vmatprep.subr.mxu0 0.0
    %809 = vmatpush1.msra.mxu0 %v145
    %810 = vmatprep.subr.mxu0 0.0
    %811 = vmatpush1.msra.mxu0 %v146
    %812 = vmatprep.subr.mxu0 0.0
    %813 = vmatpush1.msra.mxu0 %v147
    %814 = vmatprep.subr.mxu0 0.0
    %815 = vmatpush1.msra.mxu0 %v148
    %816 = vmatprep.subr.mxu0 0.0
    %817 = vmatpush1.msra.mxu0 %v149
    %818 = vmatprep.subr.mxu0 0.0
    %819 = vmatpush1.msra.mxu0 %v150
    %820 = vmatprep.subr.mxu0 0.0
    %821 = vmatpush1.msra.mxu0 %v151
    %822 = vmatprep.subr.mxu0 0.0
    %823 = vmatpush1.msra.mxu0 %v152
    %824 = vmatprep.subr.mxu0 0.0
    %825 = vmatpush1.msra.mxu0 %v153
    %826 = vmatprep.subr.mxu0 0.0
    %827 = vmatpush1.msra.mxu0 %v154
    %828 = vmatprep.subr.mxu0 0.0
    %829 = vmatpush1.msra.mxu0 %v155
    %830 = vmatprep.subr.mxu0 0.0
    %831 = vmatpush1.msra.mxu0 %v156
    %832 = vmatprep.subr.mxu0 0.0
    %833 = vmatpush1.msra.mxu0 %v157
    %834 = vmatprep.subr.mxu0 0.0
    %835 = vmatpush1.msra.mxu0 %v158
    %836 = vmatprep.subr.mxu0 0.0
    %837 = vmatpush1.msra.mxu0 %v159
    %838 = vmatprep.subr.mxu0 0.0
    %839 = vmatpush1.msra.mxu0 %v160
    %840 = vmatprep.subr.mxu0 0.0
    %841 = vmatpush1.msra.mxu0 %v161
    %842 = vmatprep.subr.mxu0 0.0
    %843 = vmatpush1.msra.mxu0 %v162
    %844 = vmatprep.subr.mxu0 0.0
    %845 = vmatpush1.msra.mxu0 %v163
    %846 = vmatprep.subr.mxu0 0.0
    %847 = vmatpush1.msra.mxu0 %v164
    %848 = vmatprep.mubr.f32.mxu0 %v36
    %849 = vmatmul.mubr.f32.gmra.mrb[0].mxu0 %v35
    %v850 = vpop.f32.mrb[0].mxu0
    %v851 = vadd.f32 %v781, %v850
    %v852 = vpop.f32.mrb[0].mxu0
    %853 = vdwg.mxu0
    %v854 = vadd.f32 %v573, %v851
    %vm855 = vcmask 64512
    %856 = vst.msk [vmem:[#allocation2] sm:$0xff] %vm855, %v854
    // Predicated region
    $region18: #{tpu_custom_call.1} parent=1 // pred_check
      _
    $region19: #{tpu_custom_call.1} parent=1 // pred_check_branch
      %858 = sbr.rel (0) target = $region21
    $region20: #{tpu_custom_call.1} parent=1 // pred_region
      %s860 = ssub.s32 128, 128
      %861 = vsyncadd [#allocation3], %s860
      %s863 = sshll.u32 [#allocation2], 4
      %s864 = int_to_ptr.vmem [resolvable:$true] %s863
      %866 = dma.vmem_to_hbm [thread:$0]  %s864, 128, %s3, [#allocation3]
    $region21: #{tpu_custom_call.1} parent=1 // pred_fallthru
      _
    // Predicated region
    $region22: #{tpu_custom_call.1} parent=1 // pred_check
      _
    $region23: #{tpu_custom_call.1} parent=1 // pred_check_branch
      %868 = sbr.rel (0) target = $region25
    $region24: #{tpu_custom_call.1} parent=1 // pred_region
      %869 = dma.done [#allocation3], 128
    $region25: #{tpu_custom_call.1} parent=1 // pred_fallthru
      _
    %870 = vsyncpa [#allocation3], 1

</llo_original>
